<compile_context>
chip_gen: v7x
topology: tpu7x:2x2x1
jax: 0.10.0
libtpu: 0.0.40
codegen_flags: <defaults>
</compile_context>

<pallas_src>
import functools
import math

import jax
import jax.numpy as jnp
from jax.experimental import pallas as pl
from jax.experimental.pallas import tpu as pltpu


# ----------------------------------------------------------------------------
# VMEM budget / tiling planner
# ----------------------------------------------------------------------------
@functools.lru_cache(maxsize=1)
def _vmem_limit_bytes() -> int:
    cap = 64 * 1024 * 1024  # conservative fallback (v7x physical VMEM)
    try:
        info = pltpu.get_tpu_info()
        cap = int(getattr(info, "vmem_capacity_bytes", cap))
    except Exception:
        pass
    # ~100 MiB on 128 MiB parts (v5e/v6e), ~56 MiB on 64 MiB parts (v7x)
    return int(min(cap * 7 // 8, 100 * 1024 * 1024))


def _plan_budget_bytes() -> int:
    # leave headroom below the compiler limit for Mosaic-internal scratch
    return int(_vmem_limit_bytes() * 0.8)


def _divisors_desc(n: int):
    return [d for d in range(n, 0, -1) if n % d == 0]


def _plan_tiles(N, H, W, cin, cout, budget):
    """Pick (tci, tH) for one layer.

    Preference order:
      1. tci == cin (weights fully resident; fetched exactly once per layer),
         with the largest row tile tH that fits (largest matmul M).
      2. Otherwise the largest tH first (so the multi-MB packed weights are
         streamed n_ci times total, NOT n_h * n_ci times), then the largest
         128-aligned channel tile that fits.
    """
    c4 = 4 * cout

    def fits(tci, th):
        m = N * th * W
        n_ci = cin // tci
        need_xdn = th < H
        wgt = 2 * (tci * cout * 9 * 2)                      # 4 packed mats, x2 buffers
        act = 2 * (m * tci * 2) * (2 if need_xdn else 1)    # x (+ x_dn), x2 buffers
        out = 2 * (m * 4 * cout * 2)                        # interleaved out, x2 buffers
        acc = (m * c4 * 4) if n_ci > 1 else 0               # f32 scratch accumulators
        tmp = 3 * m * c4 * 4 + 4 * m * tci * 2              # matmul results + shifted copies
        return wgt + act + out + acc + tmp <= budget

    for th in _divisors_desc(H):
        if fits(cin, th):
            return cin, th
    cand_tci = [d for d in _divisors_desc(cin) if d != cin and d % 128 == 0]
    for th in _divisors_desc(H):
        for tci in cand_tci:
            if fits(tci, th):
                return tci, th
    # last resort (never hit for this model's shapes)
    return (cand_tci[-1] if cand_tci else cin), 1


# ----------------------------------------------------------------------------
# host-side weight packing
# ----------------------------------------------------------------------------
def pack_convt_params(w, b, dtype=jnp.bfloat16):
    """Pack a (3,3,Cin,Cout) kernel into 4 wide matrices (one per shifted input).

    With s_pq = Y[2i+p, 2j+q]:
      r00 = x[i,  j  ] @ w00 -> [s00 | s01 | s10 | s11] contributions
      r01 = x[i,  j+1] @ w01 -> [s01 | s11]
      r10 = x[i+1,j  ] @ w10 -> [s10 | s11]
      r11 = x[i+1,j+1] @ w11 -> [s11]
    """
    w = w.astype(dtype)
    w00 = jnp.concatenate([w[1, 1], w[1, 2], w[2, 1], w[2, 2]], axis=-1)  # (Cin, 4C)
    w01 = jnp.concatenate([w[1, 0], w[2, 0]], axis=-1)                    # (Cin, 2C)
    w10 = jnp.concatenate([w[0, 1], w[0, 2]], axis=-1)                    # (Cin, 2C)
    w11 = w[0, 0]                                                         # (Cin,  C)
    b2 = jnp.concatenate([b, b]).reshape(1, -1).astype(jnp.float32)       # (1, 2C)
    return (w00, w01, w10, w11, b2)


# ----------------------------------------------------------------------------
# kernel
# ----------------------------------------------------------------------------
def _make_convt_kernel(*, n, th, wsp, cout, multi_ci, has_xdn):
    """Build a kernel specialized for one layer's tiling."""
    c = cout
    c2 = 2 * c
    c3 = 3 * c

    def _finalize(o_ref, b2, s00, s01, s10, s11):
        # parity 0 rows: [Y(2i,2j) | Y(2i,2j+1)] ; parity 1: [Y(2i+1,2j) | Y(2i+1,2j+1)]
        y0 = jnp.maximum(jnp.concatenate([s00, s01], axis=-1) + b2, 0.0)
        y1 = jnp.maximum(jnp.concatenate([s10, s11], axis=-1) + b2, 0.0)
        o_ref[:, :, 0:1, :, :] = y0.astype(o_ref.dtype).reshape(n, th, 1, wsp, c2)
        o_ref[:, :, 1:2, :, :] = y1.astype(o_ref.dtype).reshape(n, th, 1, wsp, c2)

    def kernel(*refs):
        it = iter(refs)
        x_ref = next(it)
        xdn_ref = next(it) if has_xdn else None
        w00_ref = next(it)
        w01_ref = next(it)
        w10_ref = next(it)
        w11_ref = next(it)
        b2_ref = next(it)
        o_ref = next(it)
        if multi_ci:
            a00_ref = next(it)
            a01_ref = next(it)
            a10_ref = next(it)
            a11_ref = next(it)

        x = x_ref[...]                                  # (N, tH, W, tci)
        tci = x.shape[-1]
        m = n * th * wsp

        if has_xdn:
            xdn = xdn_ref[...]                          # x[i+1, j] (halo from next tile)
        else:
            # tH == H: derive x[i+1, j] from the resident block (zeros past last row);
            # no extra HBM input, no host-side shift pass.
            zrow = jnp.zeros((n, 1, wsp, tci), x.dtype)
            xdn = jnp.concatenate([x[:, 1:, :, :], zrow], axis=1)

        # column-shifted views x[., j+1] (zero column past the last column)
        zcol = jnp.zeros((n, th, 1, tci), x.dtype)
        x01 = jnp.concatenate([x[:, :, 1:, :], zcol], axis=2)     # x[i,   j+1]
        x11 = jnp.concatenate([xdn[:, :, 1:, :], zcol], axis=2)   # x[i+1, j+1]

        x00f = x.reshape(m, tci)
        x01f = x01.reshape(m, tci)
        x10f = xdn.reshape(m, tci)
        x11f = x11.reshape(m, tci)

        f32 = jnp.float32
        # 4 packed bf16 MXU matmuls with f32 accumulation
        r00 = jnp.dot(x00f, w00_ref[...], preferred_element_type=f32)   # (m, 4C)
        r01 = jnp.dot(x01f, w01_ref[...], preferred_element_type=f32)   # (m, 2C)
        r10 = jnp.dot(x10f, w10_ref[...], preferred_element_type=f32)   # (m, 2C)
        r11 = jnp.dot(x11f, w11_ref[...], preferred_element_type=f32)   # (m,  C)

        s00 = r00[:, :c]
        s01 = r00[:, c:c2] + r01[:, :c]
        s10 = r00[:, c2:c3] + r10[:, :c]
        s11 = r00[:, c3:] + r01[:, c:] + r10[:, c:] + r11

        if not multi_ci:
            # single Cin block: no reduction axis -> no scratch, direct store
            _finalize(o_ref, b2_ref[...], s00, s01, s10, s11)
        else:
            ci = pl.program_id(1)

            @pl.when(ci == 0)
            def _init():
                a00_ref[...] = jnp.zeros_like(a00_ref)
                a01_ref[...] = jnp.zeros_like(a01_ref)
                a10_ref[...] = jnp.zeros_like(a10_ref)
                a11_ref[...] = jnp.zeros_like(a11_ref)

            a00_ref[...] += s00
            a01_ref[...] += s01
            a10_ref[...] += s10
            a11_ref[...] += s11

            @pl.when(ci == pl.num_programs(1) - 1)
            def _fin():
                _finalize(o_ref, b2_ref[...],
                          a00_ref[...], a01_ref[...], a10_ref[...], a11_ref[...])

    return kernel


# ----------------------------------------------------------------------------
# wrapper
# ----------------------------------------------------------------------------
def conv_transpose2x_relu(x, packed, *, out_dtype=jnp.bfloat16, tci=None, th=None):
    """ConvTranspose2d(kernel=3, stride=2, padding=1, output_padding=1) + ReLU.

    x      : (N, H, W, Cin) NHWC (cast to bf16)
    packed : output of pack_convt_params
    tci/th : optional tiling overrides (for tests); otherwise VMEM-planned.
    returns: (N, 2H, 2W, Cout) in out_dtype
    """
    w00, w01, w10, w11, b2 = packed
    N, H, W, cin = x.shape
    cout = w11.shape[-1]
    c2 = 2 * cout

    x = x.astype(jnp.bfloat16)

    if tci is None or th is None:
        p_tci, p_th = _plan_tiles(N, H, W, cin, cout, _plan_budget_bytes())
        tci = p_tci if tci is None else tci
        th = p_th if th is None else th
    assert cin % tci == 0 and H % th == 0

    n_ci = cin // tci
    n_h = H // th
    multi_ci = n_ci > 1
    has_xdn = n_h > 1
    m = N * th * W

    kernel = _make_convt_kernel(n=N, th=th, wsp=W, cout=cout,
                                multi_ci=multi_ci, has_xdn=has_xdn)

    in_specs = [pl.BlockSpec((N, th, W, tci), lambda h, ci: (0, h, 0, ci))]
    operands = [x]
    if has_xdn:
        # Row-shifted copy only when H is actually row-tiled (halo rows come
        # from the next tile). When tH == H the shift is derived in-kernel.
        x_dn = jnp.concatenate([x[:, 1:], jnp.zeros_like(x[:, :1])], axis=1)
        in_specs.append(pl.BlockSpec((N, th, W, tci), lambda h, ci: (0, h, 0, ci)))
        operands.append(x_dn)
    in_specs += [
        pl.BlockSpec((tci, 4 * cout), lambda h, ci: (ci, 0)),
        pl.BlockSpec((tci, 2 * cout), lambda h, ci: (ci, 0)),
        pl.BlockSpec((tci, 2 * cout), lambda h, ci: (ci, 0)),
        pl.BlockSpec((tci, cout), lambda h, ci: (ci, 0)),
        pl.BlockSpec((1, c2), lambda h, ci: (0, 0)),
    ]
    operands += [w00, w01, w10, w11, b2]

    scratch_shapes = ()
    if multi_ci:
        scratch_shapes = tuple(pltpu.VMEM((m, cout), jnp.float32) for _ in range(4))

    out = pl.pallas_call(
        kernel,
        out_shape=jax.ShapeDtypeStruct((N, H, 2, W, c2), out_dtype),
        grid_spec=pltpu.PrefetchScalarGridSpec(
            num_scalar_prefetch=0,
            grid=(n_h, n_ci),
            in_specs=in_specs,
            out_specs=pl.BlockSpec((N, th, 2, W, c2), lambda h, ci: (0, h, 0, 0, 0)),
            scratch_shapes=scratch_shapes,
        ),
        compiler_params=pltpu.CompilerParams(
            dimension_semantics=("parallel", "arbitrary"),  # ci must stay innermost
            vmem_limit_bytes=_vmem_limit_bytes(),
        ),
    )(*operands)

    # (N, H, 2, W, 2*Cout) is already Y[n, 2h+p, 2w+q, c] memory order:
    # the interleave is a free reshape (no transpose pass).
    return out.reshape(N, 2 * H, 2 * W, cout)


class FcnDecoderPallas:
    """Pallas port of FcnDecoder: 5x [ConvTranspose2d(3, s=2, p=1, op=1) + ReLU].

    Original channel stack: num_features -> 2048 -> 512 -> 256 -> 128 -> out_chans.
    `hidden` is exposed so the example below can run at small, TPU-friendly sizes.
    """

    def __init__(self, key, out_chans=64, num_features=1024,
                 hidden=(2048, 512, 256, 128)):
        chans = (num_features,) + tuple(hidden) + (out_chans,)
        self.params = []   # original f32 (w, b) — used by the reference
        self.packed = []   # pre-packed bf16 weights for the kernel
        for cin, cout in zip(chans[:-1], chans[1:]):
            key, kw, kb = jax.random.split(key, 3)
            fan_in = cin * 9
            scale = 1.0 / math.sqrt(fan_in)
            w = jax.random.uniform(kw, (3, 3, cin, cout), jnp.float32, -scale, scale)
            b = jax.random.uniform(kb, (cout,), jnp.float32, -scale, scale)
            self.params.append((w, b))
            self.packed.append(pack_convt_params(w, b))

    def __call__(self, x_nchw):
        # NCHW (PyTorch convention) -> NHWC for the TPU kernel
        x = jnp.transpose(x_nchw, (0, 2, 3, 1)).astype(jnp.bfloat16)
        for packed in self.packed:
            x = conv_transpose2x_relu(x, packed)
        # back to NCHW, f32 to match the PyTorch module's output convention
        return jnp.transpose(x, (0, 3, 1, 2)).astype(jnp.float32)


# ----------------------------------------------------------------------------
# pure-JAX reference (same bf16 compute policy, XLA conv instead of the kernel)
# ----------------------------------------------------------------------------
def _conv_transpose2x_relu_ref(x, w, b):
    w_flip = w.astype(x.dtype)[::-1, ::-1]
    y = jax.lax.conv_general_dilated(
        x, w_flip,
        window_strides=(1, 1),
        padding=((1, 2), (1, 2)),
        lhs_dilation=(2, 2),
        dimension_numbers=("NHWC", "HWIO", "NHWC"),
        preferred_element_type=jnp.float32,
    )
    y = jnp.maximum(y + b.reshape(1, 1, 1, -1).astype(jnp.float32), 0.0)
    return y.astype(x.dtype)


def _decoder_ref(decoder, x_nchw):
    x = jnp.transpose(x_nchw, (0, 2, 3, 1)).astype(jnp.bfloat16)
    for w, b in decoder.params:
        x = _conv_transpose2x_relu_ref(x, w, b)
    return jnp.transpose(x, (0, 3, 1, 2)).astype(jnp.float32)


if __name__ == "__main__":
    key = jax.random.PRNGKey(0)
    k_params, k_x, k_w2, k_b2, k_x2 = jax.random.split(key, 5)

    # Small, shape-consistent configuration (same architecture, scaled widths):
    #   channels: 16 -> 32 -> 16 -> 16 -> 8 -> 8 ; spatial 4x4 -> 128x128
    decoder = FcnDecoderPallas(k_params, out_chans=8, num_features=16,
                               hidden=(32, 16, 16, 8))

    x = jax.random.normal(k_x, (2, 16, 4, 4), dtype=jnp.float32)  # NCHW

    y = jax.block_until_ready(decoder(x))
    assert y.shape == (2, 8, 128, 128), y.shape

    # Check the full 5-layer stack against a bf16-matched pure-JAX reference.
    y_ref = jax.block_until_ready(_decoder_ref(decoder, x))
    max_err = float(jnp.max(jnp.abs(y - y_ref)))
    assert jnp.allclose(y, y_ref, rtol=2e-2, atol=2e-2), max_err

    # Also exercise the channel-tiled accumulator path (n_ci > 1) and the
    # row-tiled halo path (x_dn input) with explicit tiling overrides.
    cin_t, cout_t, H_t, W_t = 256, 8, 8, 8
    scale = 1.0 / math.sqrt(cin_t * 9)
    w_t = jax.random.uniform(k_w2, (3, 3, cin_t, cout_t), jnp.float32, -scale, scale)
    b_t = jax.random.uniform(k_b2, (cout_t,), jnp.float32, -scale, scale)
    x_t = jax.random.normal(k_x2, (2, H_t, W_t, cin_t), dtype=jnp.float32)
    x_t = x_t.astype(jnp.bfloat16)
    y_t = jax.block_until_ready(
        conv_transpose2x_relu(x_t, pack_convt_params(w_t, b_t), tci=128, th=4))
    y_t_ref = jax.block_until_ready(_conv_transpose2x_relu_ref(x_t, w_t, b_t))
    max_err_t = float(jnp.max(jnp.abs(y_t.astype(jnp.float32)
                                      - y_t_ref.astype(jnp.float32))))
    assert jnp.allclose(y_t.astype(jnp.float32), y_t_ref.astype(jnp.float32),
                        rtol=2e-2, atol=2e-2), max_err_t

    print("KERNEL_OK")
</pallas_src>

<mosaic_0001>
module attributes {stable_mosaic.version = 11 : i64} {
  func.func @kernel(%arg0: i32, %arg1: i32, %arg2: memref<2x4x4x16xbf16, #tpu.memory_space<vmem>>, %arg3: memref<16x128xbf16, #tpu.memory_space<vmem>>, %arg4: memref<16x64xbf16, #tpu.memory_space<vmem>>, %arg5: memref<16x64xbf16, #tpu.memory_space<vmem>>, %arg6: memref<16x32xbf16, #tpu.memory_space<vmem>>, %arg7: memref<1x64xf32, #tpu.memory_space<vmem>>, %arg8: memref<2x4x2x4x64xbf16, #tpu.memory_space<vmem>>) attributes {dimension_semantics = [#tpu.dimension_semantics<parallel>, #tpu.dimension_semantics<arbitrary>], iteration_bounds = array<i64: 1, 1>, scalar_prefetch = 0 : i64, scratch_operands = 0 : i64, tpu.core_type = #tpu.core_type<tc>, window_params = [{transform_indices = @transform_0, window_bounds = array<i64: 2, 4, 4, 16>}, {transform_indices = @transform_1, window_bounds = array<i64: 16, 128>}, {transform_indices = @transform_2, window_bounds = array<i64: 16, 64>}, {transform_indices = @transform_3, window_bounds = array<i64: 16, 64>}, {transform_indices = @transform_4, window_bounds = array<i64: 16, 32>}, {pipeline_mode = #tpu.pipeline_mode<synchronous>, transform_indices = @transform_5, window_bounds = array<i64: 1, 64>}, {transform_indices = @transform_6, window_bounds = array<i64: 2, 4, 2, 4, 64>}]} {
    %c0 = arith.constant 0 : index
    %c0_0 = arith.constant 0 : index
    %c0_1 = arith.constant 0 : index
    %c0_2 = arith.constant 0 : index
    %0 = vector.load %arg2[%c0, %c0_0, %c0_1, %c0_2] : memref<2x4x4x16xbf16, #tpu.memory_space<vmem>>, vector<2x4x4x16xbf16>
    %cst = arith.constant 0.000000e+00 : bf16
    %1 = vector.broadcast %cst : bf16 to vector<2x1x4x16xbf16>
    %2 = vector.extract_strided_slice %0 {offsets = [0, 1, 0, 0], sizes = [2, 3, 4, 16], strides = [1, 1, 1, 1]} : vector<2x4x4x16xbf16> to vector<2x3x4x16xbf16>
    %3 = tpu.concatenate %2, %1 in 1 : vector<2x3x4x16xbf16>, vector<2x1x4x16xbf16> -> vector<2x4x4x16xbf16>
    %cst_3 = arith.constant 0.000000e+00 : bf16
    %4 = vector.broadcast %cst_3 : bf16 to vector<2x4x1x16xbf16>
    %5 = vector.extract_strided_slice %0 {offsets = [0, 0, 1, 0], sizes = [2, 4, 3, 16], strides = [1, 1, 1, 1]} : vector<2x4x4x16xbf16> to vector<2x4x3x16xbf16>
    %6 = tpu.concatenate %5, %4 in 2 : vector<2x4x3x16xbf16>, vector<2x4x1x16xbf16> -> vector<2x4x4x16xbf16>
    %7 = vector.extract_strided_slice %3 {offsets = [0, 0, 1, 0], sizes = [2, 4, 3, 16], strides = [1, 1, 1, 1]} : vector<2x4x4x16xbf16> to vector<2x4x3x16xbf16>
    %8 = tpu.concatenate %7, %4 in 2 : vector<2x4x3x16xbf16>, vector<2x4x1x16xbf16> -> vector<2x4x4x16xbf16>
    %9 = vector.shape_cast %0 : vector<2x4x4x16xbf16> to vector<32x16xbf16>
    %10 = vector.shape_cast %6 : vector<2x4x4x16xbf16> to vector<32x16xbf16>
    %11 = vector.shape_cast %3 : vector<2x4x4x16xbf16> to vector<32x16xbf16>
    %12 = vector.shape_cast %8 : vector<2x4x4x16xbf16> to vector<32x16xbf16>
    %c0_4 = arith.constant 0 : index
    %c0_5 = arith.constant 0 : index
    %13 = vector.load %arg3[%c0_4, %c0_5] : memref<16x128xbf16, #tpu.memory_space<vmem>>, vector<16x128xbf16>
    %cst_6 = arith.constant dense<0.000000e+00> : vector<32x128xf32>
    %14 = tpu.matmul %9, %13, %cst_6 {dimension_numbers = #tpu.dot_dimension_numbers<[1], [0], [0], [1], [0, 0, 1, 1], [], []>} : vector<32x16xbf16>, vector<16x128xbf16>, vector<32x128xf32> -> vector<32x128xf32>
    %c0_7 = arith.constant 0 : index
    %c0_8 = arith.constant 0 : index
    %15 = vector.load %arg4[%c0_7, %c0_8] : memref<16x64xbf16, #tpu.memory_space<vmem>>, vector<16x64xbf16>
    %cst_9 = arith.constant dense<0.000000e+00> : vector<32x64xf32>
    %16 = tpu.matmul %10, %15, %cst_9 {dimension_numbers = #tpu.dot_dimension_numbers<[1], [0], [0], [1], [0, 0, 1, 1], [], []>} : vector<32x16xbf16>, vector<16x64xbf16>, vector<32x64xf32> -> vector<32x64xf32>
    %c0_10 = arith.constant 0 : index
    %c0_11 = arith.constant 0 : index
    %17 = vector.load %arg5[%c0_10, %c0_11] : memref<16x64xbf16, #tpu.memory_space<vmem>>, vector<16x64xbf16>
    %cst_12 = arith.constant dense<0.000000e+00> : vector<32x64xf32>
    %18 = tpu.matmul %11, %17, %cst_12 {dimension_numbers = #tpu.dot_dimension_numbers<[1], [0], [0], [1], [0, 0, 1, 1], [], []>} : vector<32x16xbf16>, vector<16x64xbf16>, vector<32x64xf32> -> vector<32x64xf32>
    %c0_13 = arith.constant 0 : index
    %c0_14 = arith.constant 0 : index
    %19 = vector.load %arg6[%c0_13, %c0_14] : memref<16x32xbf16, #tpu.memory_space<vmem>>, vector<16x32xbf16>
    %cst_15 = arith.constant dense<0.000000e+00> : vector<32x32xf32>
    %20 = tpu.matmul %12, %19, %cst_15 {dimension_numbers = #tpu.dot_dimension_numbers<[1], [0], [0], [1], [0, 0, 1, 1], [], []>} : vector<32x16xbf16>, vector<16x32xbf16>, vector<32x32xf32> -> vector<32x32xf32>
    %21 = vector.extract_strided_slice %14 {offsets = [0, 0], sizes = [32, 32], strides = [1, 1]} : vector<32x128xf32> to vector<32x32xf32>
    %22 = vector.extract_strided_slice %14 {offsets = [0, 32], sizes = [32, 32], strides = [1, 1]} : vector<32x128xf32> to vector<32x32xf32>
    %23 = vector.extract_strided_slice %16 {offsets = [0, 0], sizes = [32, 32], strides = [1, 1]} : vector<32x64xf32> to vector<32x32xf32>
    %24 = arith.addf %22, %23 : vector<32x32xf32>
    %25 = vector.extract_strided_slice %14 {offsets = [0, 64], sizes = [32, 32], strides = [1, 1]} : vector<32x128xf32> to vector<32x32xf32>
    %26 = vector.extract_strided_slice %18 {offsets = [0, 0], sizes = [32, 32], strides = [1, 1]} : vector<32x64xf32> to vector<32x32xf32>
    %27 = arith.addf %25, %26 : vector<32x32xf32>
    %28 = vector.extract_strided_slice %14 {offsets = [0, 96], sizes = [32, 32], strides = [1, 1]} : vector<32x128xf32> to vector<32x32xf32>
    %29 = vector.extract_strided_slice %16 {offsets = [0, 32], sizes = [32, 32], strides = [1, 1]} : vector<32x64xf32> to vector<32x32xf32>
    %30 = arith.addf %28, %29 : vector<32x32xf32>
    %31 = vector.extract_strided_slice %18 {offsets = [0, 32], sizes = [32, 32], strides = [1, 1]} : vector<32x64xf32> to vector<32x32xf32>
    %32 = arith.addf %30, %31 : vector<32x32xf32>
    %33 = arith.addf %32, %20 : vector<32x32xf32>
    %c0_16 = arith.constant 0 : index
    %c0_17 = arith.constant 0 : index
    %34 = vector.load %arg7[%c0_16, %c0_17] : memref<1x64xf32, #tpu.memory_space<vmem>>, vector<1x64xf32>
    %35 = tpu.concatenate %21, %24 in 1 : vector<32x32xf32>, vector<32x32xf32> -> vector<32x64xf32>
    %36 = vector.broadcast %34 : vector<1x64xf32> to vector<32x64xf32>
    %37 = arith.addf %35, %36 : vector<32x64xf32>
    %cst_18 = arith.constant 0.000000e+00 : f32
    %38 = vector.broadcast %cst_18 : f32 to vector<32x64xf32>
    %39 = arith.maximumf %37, %38 : vector<32x64xf32>
    %40 = tpu.concatenate %27, %33 in 1 : vector<32x32xf32>, vector<32x32xf32> -> vector<32x64xf32>
    %41 = vector.broadcast %34 : vector<1x64xf32> to vector<32x64xf32>
    %42 = arith.addf %40, %41 : vector<32x64xf32>
    %cst_19 = arith.constant 0.000000e+00 : f32
    %43 = vector.broadcast %cst_19 : f32 to vector<32x64xf32>
    %44 = arith.maximumf %42, %43 : vector<32x64xf32>
    %45 = arith.truncf %39 : vector<32x64xf32> to vector<32x64xbf16>
    %46 = vector.shape_cast %45 : vector<32x64xbf16> to vector<2x4x1x4x64xbf16>
    %c0_20 = arith.constant 0 : index
    %c0_21 = arith.constant 0 : index
    %c0_22 = arith.constant 0 : index
    %c0_23 = arith.constant 0 : index
    %c0_24 = arith.constant 0 : index
    %47 = vector.load %arg8[%c0_20, %c0_21, %c0_22, %c0_23, %c0_24] : memref<2x4x2x4x64xbf16, #tpu.memory_space<vmem>>, vector<2x4x1x4x64xbf16>
    tpu.vector_store %arg8[%c0_20, %c0_21, %c0_22, %c0_23, %c0_24], %46 {strides = array<i32>} : memref<2x4x2x4x64xbf16, #tpu.memory_space<vmem>>, vector<2x4x1x4x64xbf16>,
    %48 = arith.truncf %44 : vector<32x64xf32> to vector<32x64xbf16>
    %49 = vector.shape_cast %48 : vector<32x64xbf16> to vector<2x4x1x4x64xbf16>
    %c0_25 = arith.constant 0 : index
    %c0_26 = arith.constant 0 : index
    %c1 = arith.constant 1 : index
    %c0_27 = arith.constant 0 : index
    %c0_28 = arith.constant 0 : index
    %50 = vector.load %arg8[%c0_25, %c0_26, %c1, %c0_27, %c0_28] : memref<2x4x2x4x64xbf16, #tpu.memory_space<vmem>>, vector<2x4x1x4x64xbf16>
    tpu.vector_store %arg8[%c0_25, %c0_26, %c1, %c0_27, %c0_28], %49 {strides = array<i32>} : memref<2x4x2x4x64xbf16, #tpu.memory_space<vmem>>, vector<2x4x1x4x64xbf16>,
    return
  }
  func.func @transform_0(%arg0: i32, %arg1: i32) -> (i32, i32, i32, i32) {
    %c0_i32 = arith.constant 0 : i32
    %c0_i32_0 = arith.constant 0 : i32
    %c0_i32_1 = arith.constant 0 : i32
    return %c0_i32, %arg0, %c0_i32_0, %arg1 : i32, i32, i32, i32
  }
  func.func @transform_1(%arg0: i32, %arg1: i32) -> (i32, i32) {
    %c0_i32 = arith.constant 0 : i32
    %c0_i32_0 = arith.constant 0 : i32
    return %arg1, %c0_i32 : i32, i32
  }
  func.func @transform_2(%arg0: i32, %arg1: i32) -> (i32, i32) {
    %c0_i32 = arith.constant 0 : i32
    %c0_i32_0 = arith.constant 0 : i32
    return %arg1, %c0_i32 : i32, i32
  }
  func.func @transform_3(%arg0: i32, %arg1: i32) -> (i32, i32) {
    %c0_i32 = arith.constant 0 : i32
    %c0_i32_0 = arith.constant 0 : i32
    return %arg1, %c0_i32 : i32, i32
  }
  func.func @transform_4(%arg0: i32, %arg1: i32) -> (i32, i32) {
    %c0_i32 = arith.constant 0 : i32
    %c0_i32_0 = arith.constant 0 : i32
    return %arg1, %c0_i32 : i32, i32
  }
  func.func @transform_5(%arg0: i32, %arg1: i32) -> (i32, i32) {
    %c0_i32 = arith.constant 0 : i32
    %c0_i32_0 = arith.constant 0 : i32
    %c0_i32_1 = arith.constant 0 : i32
    return %c0_i32, %c0_i32_0 : i32, i32
  }
  func.func @transform_6(%arg0: i32, %arg1: i32) -> (i32, i32, i32, i32, i32) {
    %c0_i32 = arith.constant 0 : i32
    %c0_i32_0 = arith.constant 0 : i32
    %c0_i32_1 = arith.constant 0 : i32
    %c0_i32_2 = arith.constant 0 : i32
    %c0_i32_3 = arith.constant 0 : i32
    return %c0_i32, %arg0, %c0_i32_0, %c0_i32_1, %c0_i32_2 : i32, i32, i32, i32, i32
  }
}

</mosaic_0001>

<llo_original>
// kernel: tpu_custom_call.1
$region0: #{tpu_custom_call.1}
  #allocation0 [shape = 'u32[]', space=smem, size = 0x4, offset = 0x4, fixed_abs, tag = 'smem constant byte address 0x4 - core index']
  #allocation1 [shape = 'u32[144,128]{1,0:T(1,128)}', space=vmem, size = 0x12000, scoped, tag = 'internal scratch']
  %s0 = inlined_call_operand.hbm [shape: bf16[2,4,4,16], index: 0, kind: input, shape index: {}]
  %s1 = inlined_call_operand.hbm [shape: bf16[16,128], index: 1, kind: input, shape index: {}]
  %s2 = inlined_call_operand.hbm [shape: bf16[16,64], index: 2, kind: input, shape index: {}]
  %s3 = inlined_call_operand.vmem [shape: bf16[16,64], index: 3, kind: input, shape index: {}]
  %s4 = inlined_call_operand.hbm [shape: bf16[16,32], index: 4, kind: input, shape index: {}]
  %s5 = inlined_call_operand.vmem [shape: f32[1,64], index: 5, kind: input, shape index: {}]
  %s6 = inlined_call_operand.hbm [shape: bf16[2,4,2,4,64], index: 6, kind: output, shape index: {}]
  %s7 = sld [smem:[#allocation0]]
  $region50: #{tpu_custom_call.1} parent=0
    _
  %s9 = ssub.s32 1, %s7
  %s10 = scalar_select 0, %s9, %s7
  $region1: #{tpu_custom_call.1} parent=0
    #allocation2 [shape = 'u8[8192]{0}', space=vmem, size = 0x2000, scoped, tag = 'input window, operand 0, single buffered']
    #allocation3 [shape = 's32[1]{0}', space=sflag, size = 0x4, scoped, tag = 'scoped memory for tpu_custom_call.1']
    #allocation4 [shape = 's32[1]{0}', space=sflag, size = 0x4, scoped, tag = 'scoped memory for tpu_custom_call.1']
    #allocation5 [shape = 'u8[4096]{0}', space=vmem, size = 0x1000, scoped, tag = 'input window, operand 1, single buffered']
    #allocation6 [shape = 's32[1]{0}', space=sflag, size = 0x4, scoped, tag = 'scoped memory for tpu_custom_call.1']
    #allocation7 [shape = 'u8[4096]{0}', space=vmem, size = 0x1000, scoped, tag = 'input window, operand 2, single buffered']
    #allocation8 [shape = 'u8[4096]{0}', space=vmem, size = 0x1000, scoped, tag = 'input window, operand 4, single buffered']
    #allocation9 [shape = 's32[1]{0}', space=sflag, size = 0x4, scoped, tag = 'scoped memory for tpu_custom_call.1']
    #allocation10 [shape = 'u8[16384]{0}', space=vmem, size = 0x4000, scoped, tag = 'output window, operand 0, single buffered']
    %11 = vsyncpa [#allocation3], 0
    %12 = vsyncpa [#allocation6], 0
    %13 = vsyncpa [#allocation9], 0
    %14 = vsyncpa [#allocation4], 0
    // Predicated region
    $region2: #{tpu_custom_call.1} parent=1 // pred_check
      _
    $region3: #{tpu_custom_call.1} parent=1 // pred_check_branch
      %16 = sbr.rel (0) target = $region5
    $region4: #{tpu_custom_call.1} parent=1 // pred_region
      %s18 = ssub.s32 256, 256
      %19 = vsyncadd [#allocation3], %s18
      %s20 = sshll.u32 [#allocation2], 4
      %s21 = int_to_ptr.vmem [resolvable:$true] %s20
      %26 = dma.hbm_to_vmem [thread:$0]  %s0, 256, %s21, [#allocation3], 32, 32, 2
    $region5: #{tpu_custom_call.1} parent=1 // pred_fallthru
      _
    // Predicated region
    $region6: #{tpu_custom_call.1} parent=1 // pred_check
      _
    $region7: #{tpu_custom_call.1} parent=1 // pred_check_branch
      %28 = sbr.rel (0) target = $region9
    $region8: #{tpu_custom_call.1} parent=1 // pred_region
      %s30 = ssub.s32 128, 128
      %31 = vsyncadd [#allocation6], %s30
      %s32 = sshll.u32 [#allocation5], 4
      %s33 = int_to_ptr.vmem [resolvable:$true] %s32
      %38 = dma.hbm_to_vmem [thread:$0]  %s1, 128, %s33, [#allocation6], 64, 64, 4
    $region9: #{tpu_custom_call.1} parent=1 // pred_fallthru
      _
    // Predicated region
    $region10: #{tpu_custom_call.1} parent=1 // pred_check
      _
    $region11: #{tpu_custom_call.1} parent=1 // pred_check_branch
      %40 = sbr.rel (0) target = $region13
    $region12: #{tpu_custom_call.1} parent=1 // pred_region
      %s42 = ssub.s32 128, 128
      %43 = vsyncadd [#allocation6], %s42
      %s44 = sshll.u32 [#allocation7], 4
      %s45 = int_to_ptr.vmem [resolvable:$true] %s44
      %50 = dma.hbm_to_vmem [thread:$0]  %s2, 128, %s45, [#allocation6], 64, 64, 4
    $region13: #{tpu_custom_call.1} parent=1 // pred_fallthru
      _
    // Predicated region
    $region14: #{tpu_custom_call.1} parent=1 // pred_check
      _
    $region15: #{tpu_custom_call.1} parent=1 // pred_check_branch
      %52 = sbr.rel (0) target = $region17
    $region16: #{tpu_custom_call.1} parent=1 // pred_region
      _
    $region17: #{tpu_custom_call.1} parent=1 // pred_fallthru
      _
    // Predicated region
    $region18: #{tpu_custom_call.1} parent=1 // pred_check
      _
    $region19: #{tpu_custom_call.1} parent=1 // pred_check_branch
      %54 = sbr.rel (0) target = $region21
    $region20: #{tpu_custom_call.1} parent=1 // pred_region
      %s56 = ssub.s32 128, 128
      %57 = vsyncadd [#allocation9], %s56
      %s58 = sshll.u32 [#allocation8], 4
      %s59 = int_to_ptr.vmem [resolvable:$true] %s58
      %64 = dma.hbm_to_vmem [thread:$0]  %s4, 128, %s59, [#allocation9], 64, 64, 4
    $region21: #{tpu_custom_call.1} parent=1 // pred_fallthru
      _
    // Predicated region
    $region22: #{tpu_custom_call.1} parent=1 // pred_check
      _
    $region23: #{tpu_custom_call.1} parent=1 // pred_check_branch
      %66 = sbr.rel (0) target = $region25
    $region24: #{tpu_custom_call.1} parent=1 // pred_region
      _
    $region25: #{tpu_custom_call.1} parent=1 // pred_fallthru
      _
    // Predicated region
    $region26: #{tpu_custom_call.1} parent=1 // pred_check
      _
    $region27: #{tpu_custom_call.1} parent=1 // pred_check_branch
      %68 = sbr.rel (0) target = $region29
    $region28: #{tpu_custom_call.1} parent=1 // pred_region
      %69 = dma.done [#allocation3], 256
    $region29: #{tpu_custom_call.1} parent=1 // pred_fallthru
      _
    // Predicated region
    $region30: #{tpu_custom_call.1} parent=1 // pred_check
      _
    $region31: #{tpu_custom_call.1} parent=1 // pred_check_branch
      %71 = sbr.rel (0) target = $region33
    $region32: #{tpu_custom_call.1} parent=1 // pred_region
      %72 = dma.done [#allocation6], 128
    $region33: #{tpu_custom_call.1} parent=1 // pred_fallthru
      _
    // Predicated region
    $region34: #{tpu_custom_call.1} parent=1 // pred_check
      _
    $region35: #{tpu_custom_call.1} parent=1 // pred_check_branch
      %74 = sbr.rel (0) target = $region37
    $region36: #{tpu_custom_call.1} parent=1 // pred_region
      %75 = dma.done [#allocation6], 128
    $region37: #{tpu_custom_call.1} parent=1 // pred_fallthru
      _
    // Predicated region
    $region38: #{tpu_custom_call.1} parent=1 // pred_check
      _
    $region39: #{tpu_custom_call.1} parent=1 // pred_check_branch
      %77 = sbr.rel (0) target = $region41
    $region40: #{tpu_custom_call.1} parent=1 // pred_region
      %78 = dma.done [#allocation9], 128
    $region41: #{tpu_custom_call.1} parent=1 // pred_fallthru
      _
    %v80 = vld [vmem:[#allocation2] sm:$0x3]
    %v81 = vld [vmem:[#allocation2 + $0x2] sm:$0x3]
    %v82 = vld [vmem:[#allocation2 + $0x4] sm:$0x3]
    %v83 = vld [vmem:[#allocation2 + $0x6] sm:$0x3]
    %v84 = vld [vmem:[#allocation2 + $0x8] sm:$0x3]
    %v85 = vld [vmem:[#allocation2 + $0xa] sm:$0x3]
    %v86 = vld [vmem:[#allocation2 + $0xc] sm:$0x3]
    %v87 = vld [vmem:[#allocation2 + $0xe] sm:$0x3]
    %v97 = vunpack.c.l.s4 1983009808
    %v98 = vunpack.c.0.s8 %v97
    %v99 = vlaneseq
    %v100 = vshrl.u32 %v99, 7
    %v101 = vsub.s32 %v98, %v100
    %v102 = vrot.slane %v80, %v101
    %v104 = vunpack.c.l.s4 1983009808
    %v105 = vunpack.c.0.s8 %v104
    %v106 = vlaneseq
    %v107 = vshrl.u32 %v106, 7
    %v108 = vsub.s32 %v105, %v107
    %v109 = vrot.slane %v81, %v108
    %v111 = vunpack.c.l.s4 1983009808
    %v112 = vunpack.c.0.s8 %v111
    %v113 = vlaneseq
    %v114 = vshrl.u32 %v113, 7
    %v115 = vsub.s32 %v112, %v114
    %v116 = vrot.slane %v82, %v115
    %v118 = vunpack.c.l.s4 1983009808
    %v119 = vunpack.c.0.s8 %v118
    %v120 = vlaneseq
    %v121 = vshrl.u32 %v120, 7
    %v122 = vsub.s32 %v119, %v121
    %v123 = vrot.slane %v83, %v122
    %v125 = vunpack.c.l.s4 1983009808
    %v126 = vunpack.c.0.s8 %v125
    %v127 = vlaneseq
    %v128 = vshrl.u32 %v127, 7
    %v129 = vsub.s32 %v126, %v128
    %v130 = vrot.slane %v84, %v129
    %v132 = vunpack.c.l.s4 1983009808
    %v133 = vunpack.c.0.s8 %v132
    %v134 = vlaneseq
    %v135 = vshrl.u32 %v134, 7
    %v136 = vsub.s32 %v133, %v135
    %v137 = vrot.slane %v85, %v136
    %v139 = vunpack.c.l.s4 1983009808
    %v140 = vunpack.c.0.s8 %v139
    %v141 = vlaneseq
    %v142 = vshrl.u32 %v141, 7
    %v143 = vsub.s32 %v140, %v142
    %v144 = vrot.slane %v86, %v143
    %v146 = vunpack.c.l.s4 1983009808
    %v147 = vunpack.c.0.s8 %v146
    %v148 = vlaneseq
    %v149 = vshrl.u32 %v148, 7
    %v150 = vsub.s32 %v147, %v149
    %v151 = vrot.slane %v87, %v150
    %v153 = vshrl.u32 %v102, 16
    %v155 = vshll.u32 %v102, 16
    %v157 = vrot.slane %v155, 1
    %v158 = vor.u32 %v153, %v157
    %v160 = vshrl.u32 %v109, 16
    %v162 = vshll.u32 %v109, 16
    %v164 = vrot.slane %v162, 1
    %v165 = vor.u32 %v160, %v164
    %v167 = vshrl.u32 %v116, 16
    %v169 = vshll.u32 %v116, 16
    %v171 = vrot.slane %v169, 1
    %v172 = vor.u32 %v167, %v171
    %v174 = vshrl.u32 %v123, 16
    %v176 = vshll.u32 %v123, 16
    %v178 = vrot.slane %v176, 1
    %v179 = vor.u32 %v174, %v178
    %v181 = vshrl.u32 %v130, 16
    %v183 = vshll.u32 %v130, 16
    %v185 = vrot.slane %v183, 1
    %v186 = vor.u32 %v181, %v185
    %v188 = vshrl.u32 %v137, 16
    %v190 = vshll.u32 %v137, 16
    %v192 = vrot.slane %v190, 1
    %v193 = vor.u32 %v188, %v192
    %v195 = vshrl.u32 %v144, 16
    %v197 = vshll.u32 %v144, 16
    %v199 = vrot.slane %v197, 1
    %v200 = vor.u32 %v195, %v199
    %v202 = vshrl.u32 %v151, 16
    %v204 = vshll.u32 %v151, 16
    %v206 = vrot.slane %v204, 1
    %v207 = vor.u32 %v202, %v206
    %vm216 = vcmask 1041408
    %vm217 = vsmask.f32 1280
    %vm218 = vmand %vm216, %vm217
    %v219 = vsel %vm218, %v158, 0
    %v220 = vsel %vm218, %v165, 0
    %v221 = vsel %vm218, %v172, 0
    %v222 = vsel %vm218, %v179, 0
    %v223 = vsel %vm218, %v186, 0
    %v224 = vsel %vm218, %v193, 0
    %v225 = vsel %vm218, %v200, 0
    %v226 = vsel %vm218, %v207, 0
    %v229 = vunpack.c.l.s4 1983009808
    %v230 = vunpack.c.0.s8 %v229
    %v231 = vlaneseq
    %v232 = vshrl.u32 %v231, 7
    %v233 = vsub.s32 %v230, %v232
    %v234 = vrot.slane 0, %v233
    %v236 = vshrl.u32 %v234, 16
    %v238 = vshll.u32 %v234, 16
    %v240 = vrot.slane %v238, 1
    %v241 = vor.u32 %v236, %v240
    %v243 = vsel %vm218, %v241, 0
    %v244 = vld [vmem:[#allocation5] sm:$0xf]
    %v245 = vld [vmem:[#allocation5 + $0x4] sm:$0xf]
    %v246 = vcombine.low %v80, %v81
    %v247 = vcombine.low %v82, %v83
    %v249 = vunpack.c.l.s4 1983009808
    %v250 = vunpack.c.0.s8 %v249
    %v251 = vlaneseq
    %v252 = vshrl.u32 %v251, 7
    %v253 = vsub.s32 %v250, %v252
    %v254 = vrot.slane %v246, %v253
    %v256 = vunpack.c.l.s4 1983009808
    %v257 = vunpack.c.0.s8 %v256
    %v258 = vlaneseq
    %v259 = vshrl.u32 %v258, 7
    %v260 = vsub.s32 %v257, %v259
    %v261 = vrot.slane %v247, %v260
    %v262 = vcombine.low %v254, %v261
    %v263 = vcombine.low %v84, %v85
    %v264 = vcombine.low %v86, %v87
    %v266 = vunpack.c.l.s4 1983009808
    %v267 = vunpack.c.0.s8 %v266
    %v268 = vlaneseq
    %v269 = vshrl.u32 %v268, 7
    %v270 = vsub.s32 %v267, %v269
    %v271 = vrot.slane %v263, %v270
    %v273 = vunpack.c.l.s4 1983009808
    %v274 = vunpack.c.0.s8 %v273
    %v275 = vlaneseq
    %v276 = vshrl.u32 %v275, 7
    %v277 = vsub.s32 %v274, %v276
    %v278 = vrot.slane %v264, %v277
    %v279 = vcombine.low %v271, %v278
    %v282 = vunpack.c.l.b16 %v244
    %v283 = vunpack.c.l.b16 %v245
    %v284 = vpack.c.b16 %v283, %v282
    %vm286 = vcmask 130048
    %v288 = vsel %vm286, %v262, 0
    %v291 = vsel %vm286, %v279, 0
    %293 = vmatprep.subr.bf16.mxu0 0
    %294 = vmatpush1.bf16.msra.mxu0 %v284
    %295 = vmatprep.subr.bf16.mxu0 0
    %296 = vmatpush1.bf16.msra.mxu0 0
    %297 = vmatprep.subr.bf16.mxu0 0
    %298 = vmatpush1.bf16.msra.mxu0 0
    %299 = vmatprep.subr.bf16.mxu0 0
    %300 = vmatpush1.bf16.msra.mxu0 0
    %301 = vmatprep.subr.bf16.mxu0 0
    %302 = vmatpush1.bf16.msra.mxu0 0
    %303 = vmatprep.subr.bf16.mxu0 0
    %304 = vmatpush1.bf16.msra.mxu0 0
    %305 = vmatprep.subr.bf16.mxu0 0
    %306 = vmatpush1.bf16.msra.mxu0 0
    %307 = vmatprep.subr.bf16.mxu0 0
    %308 = vmatpush1.bf16.msra.mxu0 0
    %309 = vmatprep.subr.bf16.mxu0 0
    %310 = vmatpush1.bf16.msra.mxu0 0
    %311 = vmatprep.subr.bf16.mxu0 0
    %312 = vmatpush1.bf16.msra.mxu0 0
    %313 = vmatprep.subr.bf16.mxu0 0
    %314 = vmatpush1.bf16.msra.mxu0 0
    %315 = vmatprep.subr.bf16.mxu0 0
    %316 = vmatpush1.bf16.msra.mxu0 0
    %317 = vmatprep.subr.bf16.mxu0 0
    %318 = vmatpush1.bf16.msra.mxu0 0
    %319 = vmatprep.subr.bf16.mxu0 0
    %320 = vmatpush1.bf16.msra.mxu0 0
    %321 = vmatprep.subr.bf16.mxu0 0
    %322 = vmatpush1.bf16.msra.mxu0 0
    %323 = vmatprep.subr.bf16.mxu0 0
    %324 = vmatpush1.bf16.msra.mxu0 0
    %325 = vmatprep.mubr.bf16.mxu0 0
    %326 = vmatmul.mubr.bf16.gmra.mrb[0].mxu0 %v288
    %v327 = vpop.f32.mrb[0].mxu0
    %v328 = vadd.f32 0.0, %v327
    %v329 = vpop.f32.mrb[0].mxu0
    %v330 = vpop.f32.mrb[0].mxu0
    %v331 = vadd.f32 0.0, %v330
    %v332 = vpop.f32.mrb[0].mxu0
    %333 = vmatprep.mubr.bf16.mxu0 0
    %334 = vmatmul.mubr.bf16.gmra.mrb[0].mxu0 %v291
    %v335 = vpop.f32.mrb[0].mxu0
    %v336 = vadd.f32 0.0, %v335
    %v337 = vpop.f32.mrb[0].mxu0
    %v338 = vpop.f32.mrb[0].mxu0
    %v339 = vadd.f32 0.0, %v338
    %v340 = vpop.f32.mrb[0].mxu0
    %341 = vdwg.mxu0
    %v342 = vld [vmem:[#allocation7] sm:$0xf]
    %v343 = vld [vmem:[#allocation7 + $0x4] sm:$0xf]
    %v352 = vcombine.low %v219, %v220
    %v353 = vcombine.low %v221, %v222
    %v355 = vunpack.c.l.s4 1983009808
    %v356 = vunpack.c.0.s8 %v355
    %v357 = vlaneseq
    %v358 = vshrl.u32 %v357, 7
    %v359 = vsub.s32 %v356, %v358
    %v360 = vrot.slane %v352, %v359
    %v362 = vunpack.c.l.s4 1983009808
    %v363 = vunpack.c.0.s8 %v362
    %v364 = vlaneseq
    %v365 = vshrl.u32 %v364, 7
    %v366 = vsub.s32 %v363, %v365
    %v367 = vrot.slane %v353, %v366
    %v368 = vcombine.low %v360, %v367
    %v369 = vcombine.low %v223, %v224
    %v370 = vcombine.low %v225, %v226
    %v372 = vunpack.c.l.s4 1983009808
    %v373 = vunpack.c.0.s8 %v372
    %v374 = vlaneseq
    %v375 = vshrl.u32 %v374, 7
    %v376 = vsub.s32 %v373, %v375
    %v377 = vrot.slane %v369, %v376
    %v379 = vunpack.c.l.s4 1983009808
    %v380 = vunpack.c.0.s8 %v379
    %v381 = vlaneseq
    %v382 = vshrl.u32 %v381, 7
    %v383 = vsub.s32 %v380, %v382
    %v384 = vrot.slane %v370, %v383
    %v385 = vcombine.low %v377, %v384
    %v388 = vunpack.c.l.b16 %v342
    %v389 = vunpack.c.l.b16 %v343
    %v390 = vpack.c.b16 %v389, %v388
    %v393 = vsel %vm286, %v368, 0
    %v396 = vsel %vm286, %v385, 0
    %398 = vmatprep.subr.bf16.mxu0 0
    %399 = vmatpush1.bf16.msra.mxu0 %v390
    %400 = vmatprep.subr.bf16.mxu0 0
    %401 = vmatpush1.bf16.msra.mxu0 0
    %402 = vmatprep.subr.bf16.mxu0 0
    %403 = vmatpush1.bf16.msra.mxu0 0
    %404 = vmatprep.subr.bf16.mxu0 0
    %405 = vmatpush1.bf16.msra.mxu0 0
    %406 = vmatprep.subr.bf16.mxu0 0
    %407 = vmatpush1.bf16.msra.mxu0 0
    %408 = vmatprep.subr.bf16.mxu0 0
    %409 = vmatpush1.bf16.msra.mxu0 0
    %410 = vmatprep.subr.bf16.mxu0 0
    %411 = vmatpush1.bf16.msra.mxu0 0
    %412 = vmatprep.subr.bf16.mxu0 0
    %413 = vmatpush1.bf16.msra.mxu0 0
    %414 = vmatprep.subr.bf16.mxu0 0
    %415 = vmatpush1.bf16.msra.mxu0 0
    %416 = vmatprep.subr.bf16.mxu0 0
    %417 = vmatpush1.bf16.msra.mxu0 0
    %418 = vmatprep.subr.bf16.mxu0 0
    %419 = vmatpush1.bf16.msra.mxu0 0
    %420 = vmatprep.subr.bf16.mxu0 0
    %421 = vmatpush1.bf16.msra.mxu0 0
    %422 = vmatprep.subr.bf16.mxu0 0
    %423 = vmatpush1.bf16.msra.mxu0 0
    %424 = vmatprep.subr.bf16.mxu0 0
    %425 = vmatpush1.bf16.msra.mxu0 0
    %426 = vmatprep.subr.bf16.mxu0 0
    %427 = vmatpush1.bf16.msra.mxu0 0
    %428 = vmatprep.subr.bf16.mxu0 0
    %429 = vmatpush1.bf16.msra.mxu0 0
    %430 = vmatprep.mubr.bf16.mxu0 0
    %431 = vmatmul.mubr.bf16.gmra.mrb[0].mxu0 %v393
    %v432 = vpop.f32.mrb[0].mxu0
    %v433 = vadd.f32 0.0, %v432
    %v434 = vpop.f32.mrb[0].mxu0
    %v435 = vpop.f32.mrb[0].mxu0
    %v436 = vadd.f32 0.0, %v435
    %v437 = vpop.f32.mrb[0].mxu0
    %438 = vmatprep.mubr.bf16.mxu0 0
    %439 = vmatmul.mubr.bf16.gmra.mrb[0].mxu0 %v396
    %v440 = vpop.f32.mrb[0].mxu0
    %v441 = vadd.f32 0.0, %v440
    %v442 = vpop.f32.mrb[0].mxu0
    %v443 = vpop.f32.mrb[0].mxu0
    %v444 = vadd.f32 0.0, %v443
    %v445 = vpop.f32.mrb[0].mxu0
    %446 = vdwg.mxu0
    %v447 = vld [vmem:[%s3] sm:$0xf]
    %v448 = vld [vmem:[%s3 + $0x4] sm:$0xf]
    %v449 = vcombine.low %v81, %v82
    %v450 = vcombine.low %v83, 0
    %v452 = vunpack.c.l.s4 1983009808
    %v453 = vunpack.c.0.s8 %v452
    %v454 = vlaneseq
    %v455 = vshrl.u32 %v454, 7
    %v456 = vsub.s32 %v453, %v455
    %v457 = vrot.slane %v449, %v456
    %v459 = vunpack.c.l.s4 1983009808
    %v460 = vunpack.c.0.s8 %v459
    %v461 = vlaneseq
    %v462 = vshrl.u32 %v461, 7
    %v463 = vsub.s32 %v460, %v462
    %v464 = vrot.slane %v450, %v463
    %v465 = vcombine.low %v457, %v464
    %v466 = vcombine.low %v85, %v86
    %v467 = vcombine.low %v87, 0
    %v469 = vunpack.c.l.s4 1983009808
    %v470 = vunpack.c.0.s8 %v469
    %v471 = vlaneseq
    %v472 = vshrl.u32 %v471, 7
    %v473 = vsub.s32 %v470, %v472
    %v474 = vrot.slane %v466, %v473
    %v476 = vunpack.c.l.s4 1983009808
    %v477 = vunpack.c.0.s8 %v476
    %v478 = vlaneseq
    %v479 = vshrl.u32 %v478, 7
    %v480 = vsub.s32 %v477, %v479
    %v481 = vrot.slane %v467, %v480
    %v482 = vcombine.low %v474, %v481
    %v485 = vunpack.c.l.b16 %v447
    %v486 = vunpack.c.l.b16 %v448
    %v487 = vpack.c.b16 %v486, %v485
    %v490 = vsel %vm286, %v465, 0
    %v493 = vsel %vm286, %v482, 0
    %495 = vmatprep.subr.bf16.mxu0 0
    %496 = vmatpush1.bf16.msra.mxu0 %v487
    %497 = vmatprep.subr.bf16.mxu0 0
    %498 = vmatpush1.bf16.msra.mxu0 0
    %499 = vmatprep.subr.bf16.mxu0 0
    %500 = vmatpush1.bf16.msra.mxu0 0
    %501 = vmatprep.subr.bf16.mxu0 0
    %502 = vmatpush1.bf16.msra.mxu0 0
    %503 = vmatprep.subr.bf16.mxu0 0
    %504 = vmatpush1.bf16.msra.mxu0 0
    %505 = vmatprep.subr.bf16.mxu0 0
    %506 = vmatpush1.bf16.msra.mxu0 0
    %507 = vmatprep.subr.bf16.mxu0 0
    %508 = vmatpush1.bf16.msra.mxu0 0
    %509 = vmatprep.subr.bf16.mxu0 0
    %510 = vmatpush1.bf16.msra.mxu0 0
    %511 = vmatprep.subr.bf16.mxu0 0
    %512 = vmatpush1.bf16.msra.mxu0 0
    %513 = vmatprep.subr.bf16.mxu0 0
    %514 = vmatpush1.bf16.msra.mxu0 0
    %515 = vmatprep.subr.bf16.mxu0 0
    %516 = vmatpush1.bf16.msra.mxu0 0
    %517 = vmatprep.subr.bf16.mxu0 0
    %518 = vmatpush1.bf16.msra.mxu0 0
    %519 = vmatprep.subr.bf16.mxu0 0
    %520 = vmatpush1.bf16.msra.mxu0 0
    %521 = vmatprep.subr.bf16.mxu0 0
    %522 = vmatpush1.bf16.msra.mxu0 0
    %523 = vmatprep.subr.bf16.mxu0 0
    %524 = vmatpush1.bf16.msra.mxu0 0
    %525 = vmatprep.subr.bf16.mxu0 0
    %526 = vmatpush1.bf16.msra.mxu0 0
    %527 = vmatprep.mubr.bf16.mxu0 0
    %528 = vmatmul.mubr.bf16.gmra.mrb[0].mxu0 %v490
    %v529 = vpop.f32.mrb[0].mxu0
    %v530 = vadd.f32 0.0, %v529
    %v531 = vpop.f32.mrb[0].mxu0
    %v532 = vpop.f32.mrb[0].mxu0
    %v533 = vadd.f32 0.0, %v532
    %v534 = vpop.f32.mrb[0].mxu0
    %535 = vmatprep.mubr.bf16.mxu0 0
    %536 = vmatmul.mubr.bf16.gmra.mrb[0].mxu0 %v493
    %v537 = vpop.f32.mrb[0].mxu0
    %v538 = vadd.f32 0.0, %v537
    %v539 = vpop.f32.mrb[0].mxu0
    %v540 = vpop.f32.mrb[0].mxu0
    %v541 = vadd.f32 0.0, %v540
    %v542 = vpop.f32.mrb[0].mxu0
    %543 = vdwg.mxu0
    %v544 = vld [vmem:[#allocation8] sm:$0xf]
    %v545 = vld [vmem:[#allocation8 + $0x4] sm:$0xf]
    %v547 = vcombine.low %v220, %v221
    %v548 = vcombine.low %v222, %v243
    %v550 = vunpack.c.l.s4 1983009808
    %v551 = vunpack.c.0.s8 %v550
    %v552 = vlaneseq
    %v553 = vshrl.u32 %v552, 7
    %v554 = vsub.s32 %v551, %v553
    %v555 = vrot.slane %v547, %v554
    %v557 = vunpack.c.l.s4 1983009808
    %v558 = vunpack.c.0.s8 %v557
    %v559 = vlaneseq
    %v560 = vshrl.u32 %v559, 7
    %v561 = vsub.s32 %v558, %v560
    %v562 = vrot.slane %v548, %v561
    %v563 = vcombine.low %v555, %v562
    %v564 = vcombine.low %v224, %v225
    %v565 = vcombine.low %v226, %v243
    %v567 = vunpack.c.l.s4 1983009808
    %v568 = vunpack.c.0.s8 %v567
    %v569 = vlaneseq
    %v570 = vshrl.u32 %v569, 7
    %v571 = vsub.s32 %v568, %v570
    %v572 = vrot.slane %v564, %v571
    %v574 = vunpack.c.l.s4 1983009808
    %v575 = vunpack.c.0.s8 %v574
    %v576 = vlaneseq
    %v577 = vshrl.u32 %v576, 7
    %v578 = vsub.s32 %v575, %v577
    %v579 = vrot.slane %v565, %v578
    %v580 = vcombine.low %v572, %v579
    %v583 = vunpack.c.l.b16 %v544
    %v584 = vunpack.c.l.b16 %v545
    %v585 = vpack.c.b16 %v584, %v583
    %v588 = vsel %vm286, %v563, 0
    %v591 = vsel %vm286, %v580, 0
    %593 = vmatprep.subr.bf16.mxu0 0
    %594 = vmatpush1.bf16.msra.mxu0 %v585
    %595 = vmatprep.subr.bf16.mxu0 0
    %596 = vmatpush1.bf16.msra.mxu0 0
    %597 = vmatprep.subr.bf16.mxu0 0
    %598 = vmatpush1.bf16.msra.mxu0 0
    %599 = vmatprep.subr.bf16.mxu0 0
    %600 = vmatpush1.bf16.msra.mxu0 0
    %601 = vmatprep.subr.bf16.mxu0 0
    %602 = vmatpush1.bf16.msra.mxu0 0
    %603 = vmatprep.subr.bf16.mxu0 0
    %604 = vmatpush1.bf16.msra.mxu0 0
    %605 = vmatprep.subr.bf16.mxu0 0
    %606 = vmatpush1.bf16.msra.mxu0 0
    %607 = vmatprep.subr.bf16.mxu0 0
    %608 = vmatpush1.bf16.msra.mxu0 0
    %609 = vmatprep.subr.bf16.mxu0 0
    %610 = vmatpush1.bf16.msra.mxu0 0
    %611 = vmatprep.subr.bf16.mxu0 0
    %612 = vmatpush1.bf16.msra.mxu0 0
    %613 = vmatprep.subr.bf16.mxu0 0
    %614 = vmatpush1.bf16.msra.mxu0 0
    %615 = vmatprep.subr.bf16.mxu0 0
    %616 = vmatpush1.bf16.msra.mxu0 0
    %617 = vmatprep.subr.bf16.mxu0 0
    %618 = vmatpush1.bf16.msra.mxu0 0
    %619 = vmatprep.subr.bf16.mxu0 0
    %620 = vmatpush1.bf16.msra.mxu0 0
    %621 = vmatprep.subr.bf16.mxu0 0
    %622 = vmatpush1.bf16.msra.mxu0 0
    %623 = vmatprep.subr.bf16.mxu0 0
    %624 = vmatpush1.bf16.msra.mxu0 0
    %625 = vmatprep.mubr.bf16.mxu0 0
    %626 = vmatmul.mubr.bf16.gmra.mrb[0].mxu0 %v588
    %v627 = vpop.f32.mrb[0].mxu0
    %v628 = vadd.f32 0.0, %v627
    %v629 = vpop.f32.mrb[0].mxu0
    %v630 = vpop.f32.mrb[0].mxu0
    %v631 = vadd.f32 0.0, %v630
    %v632 = vpop.f32.mrb[0].mxu0
    %633 = vmatprep.mubr.bf16.mxu0 0
    %634 = vmatmul.mubr.bf16.gmra.mrb[0].mxu0 %v591
    %v635 = vpop.f32.mrb[0].mxu0
    %v636 = vadd.f32 0.0, %v635
    %v637 = vpop.f32.mrb[0].mxu0
    %v638 = vpop.f32.mrb[0].mxu0
    %v639 = vadd.f32 0.0, %v638
    %v640 = vpop.f32.mrb[0].mxu0
    %641 = vdwg.mxu0
    %646 = vrot.lane.b32.xlu0 %v433, 32
    %v647 = vpop.permute.xlu0 %646
    %648 = vrot.lane.b32.xlu0 %v436, 32
    %v649 = vpop.permute.xlu0 %648
    %650 = vrot.lane.b32.xlu0 %v441, 32
    %v651 = vpop.permute.xlu0 %650
    %652 = vrot.lane.b32.xlu0 %v444, 32
    %v653 = vpop.permute.xlu0 %652
    %v658 = vadd.f32 %v328, %v647
    %v659 = vadd.f32 %v331, %v649
    %v660 = vadd.f32 %v336, %v651
    %v661 = vadd.f32 %v339, %v653
    %666 = vrot.lane.b32.xlu0 %v530, 64
    %v667 = vpop.permute.xlu0 %666
    %668 = vrot.lane.b32.xlu0 %v533, 64
    %v669 = vpop.permute.xlu0 %668
    %670 = vrot.lane.b32.xlu0 %v538, 64
    %v671 = vpop.permute.xlu0 %670
    %672 = vrot.lane.b32.xlu0 %v541, 64
    %v673 = vpop.permute.xlu0 %672
    %v678 = vadd.f32 %v328, %v667
    %v679 = vadd.f32 %v331, %v669
    %v680 = vadd.f32 %v336, %v671
    %v681 = vadd.f32 %v339, %v673
    %682 = vrot.lane.b32.xlu0 %v433, 64
    %v683 = vpop.permute.xlu0 %682
    %684 = vrot.lane.b32.xlu0 %v436, 64
    %v685 = vpop.permute.xlu0 %684
    %686 = vrot.lane.b32.xlu0 %v441, 64
    %v687 = vpop.permute.xlu0 %686
    %688 = vrot.lane.b32.xlu0 %v444, 64
    %v689 = vpop.permute.xlu0 %688
    %v694 = vadd.f32 %v328, %v683
    %v695 = vadd.f32 %v331, %v685
    %v696 = vadd.f32 %v336, %v687
    %v697 = vadd.f32 %v339, %v689
    %v698 = vadd.f32 %v694, %v667
    %v699 = vadd.f32 %v695, %v669
    %v700 = vadd.f32 %v696, %v671
    %v701 = vadd.f32 %v697, %v673
    %706 = vrot.lane.b32.xlu0 %v628, 96
    %v707 = vpop.permute.xlu0 %706
    %708 = vrot.lane.b32.xlu0 %v631, 96
    %v709 = vpop.permute.xlu0 %708
    %710 = vrot.lane.b32.xlu0 %v636, 96
    %v711 = vpop.permute.xlu0 %710
    %712 = vrot.lane.b32.xlu0 %v639, 96
    %v713 = vpop.permute.xlu0 %712
    %v718 = vadd.f32 %v698, %v707
    %v719 = vadd.f32 %v699, %v709
    %v720 = vadd.f32 %v700, %v711
    %v721 = vadd.f32 %v701, %v713
    %v722 = vld [vmem:[%s5] sm:$0x1]
    %vm723 = vcmask 261120
    %v724 = vsel %vm723, %v328, %v658
    %v725 = vsel %vm723, %v331, %v659
    %v726 = vsel %vm723, %v336, %v660
    %v727 = vsel %vm723, %v339, %v661
    %v729 = vlaneseq
    %v730 = vshrl.u32 %v729, 7
    %v731 = vsub.s32 0, %v730
    %v732 = vrot.slane %v722, %v731
    %v734 = vadd.f32 %v724, %v732
    %v735 = vadd.f32 %v725, %v732
    %v736 = vadd.f32 %v726, %v732
    %v737 = vadd.f32 %v727, %v732
    %v738 = vmax.f32 %v734, 0.0
    %v739 = vmax.f32 %v735, 0.0
    %v740 = vmax.f32 %v736, 0.0
    %v741 = vmax.f32 %v737, 0.0
    %746 = vrot.lane.b32.xlu0 %v678, 64
    %v747 = vpop.permute.xlu0 %746
    %748 = vrot.lane.b32.xlu0 %v679, 64
    %v749 = vpop.permute.xlu0 %748
    %750 = vrot.lane.b32.xlu0 %v680, 64
    %v751 = vpop.permute.xlu0 %750
    %752 = vrot.lane.b32.xlu0 %v681, 64
    %v753 = vpop.permute.xlu0 %752
    %762 = vrot.lane.b32.xlu0 %v718, 64
    %v763 = vpop.permute.xlu0 %762
    %764 = vrot.lane.b32.xlu0 %v719, 64
    %v765 = vpop.permute.xlu0 %764
    %766 = vrot.lane.b32.xlu0 %v720, 64
    %v767 = vpop.permute.xlu0 %766
    %768 = vrot.lane.b32.xlu0 %v721, 64
    %v769 = vpop.permute.xlu0 %768
    %v774 = vsel %vm723, %v747, %v763
    %v775 = vsel %vm723, %v749, %v765
    %v776 = vsel %vm723, %v751, %v767
    %v777 = vsel %vm723, %v753, %v769
    %v778 = vadd.f32 %v774, %v732
    %v779 = vadd.f32 %v775, %v732
    %v780 = vadd.f32 %v776, %v732
    %v781 = vadd.f32 %v777, %v732
    %v782 = vmax.f32 %v778, 0.0
    %v783 = vmax.f32 %v779, 0.0
    %v784 = vmax.f32 %v780, 0.0
    %v785 = vmax.f32 %v781, 0.0
    %v786 = vpack.c.bf16 %v739, %v738
    %v787 = vpack.c.bf16 %v741, %v740
    %v790 = vcombine.high %v786, %v786
    %v792 = vunpack.c.l.s4 1983009808
    %v793 = vunpack.c.0.s8 %v792
    %v794 = vlaneseq
    %v795 = vshrl.u32 %v794, 7
    %v796 = vsub.s32 %v793, %v795
    %v797 = vrot.slane %v786, %v796
    %v799 = vunpack.c.l.s4 1983009808
    %v800 = vunpack.c.0.s8 %v799
    %v801 = vlaneseq
    %v802 = vshrl.u32 %v801, 7
    %v803 = vsub.s32 %v800, %v802
    %v804 = vrot.slane %v790, %v803
    %v805 = vcombine.high %v797, %v797
    %v806 = vcombine.high %v804, %v804
    %v807 = vcombine.high %v787, %v787
    %v809 = vunpack.c.l.s4 1983009808
    %v810 = vunpack.c.0.s8 %v809
    %v811 = vlaneseq
    %v812 = vshrl.u32 %v811, 7
    %v813 = vsub.s32 %v810, %v812
    %v814 = vrot.slane %v787, %v813
    %v816 = vunpack.c.l.s4 1983009808
    %v817 = vunpack.c.0.s8 %v816
    %v818 = vlaneseq
    %v819 = vshrl.u32 %v818, 7
    %v820 = vsub.s32 %v817, %v819
    %v821 = vrot.slane %v807, %v820
    %v822 = vcombine.high %v814, %v814
    %v823 = vcombine.high %v821, %v821
    %vm832 = vcmask 517120
    %833 = vst.msk [vmem:[#allocation10] sm:$0x3] %vm832, %v797
    %834 = vst.msk [vmem:[#allocation10 + $0x4] sm:$0x3] %vm832, %v805
    %835 = vst.msk [vmem:[#allocation10 + $0x8] sm:$0x3] %vm832, %v804
    %836 = vst.msk [vmem:[#allocation10 + $0xc] sm:$0x3] %vm832, %v806
    %837 = vst.msk [vmem:[#allocation10 + $0x10] sm:$0x3] %vm832, %v814
    %838 = vst.msk [vmem:[#allocation10 + $0x14] sm:$0x3] %vm832, %v822
    %839 = vst.msk [vmem:[#allocation10 + $0x18] sm:$0x3] %vm832, %v821
    %840 = vst.msk [vmem:[#allocation10 + $0x1c] sm:$0x3] %vm832, %v823
    %v841 = vpack.c.bf16 %v783, %v782
    %v842 = vpack.c.bf16 %v785, %v784
    %v845 = vcombine.high %v841, %v841
    %v847 = vunpack.c.l.s4 1983009808
    %v848 = vunpack.c.0.s8 %v847
    %v849 = vlaneseq
    %v850 = vshrl.u32 %v849, 7
    %v851 = vsub.s32 %v848, %v850
    %v852 = vrot.slane %v841, %v851
    %v854 = vunpack.c.l.s4 1983009808
    %v855 = vunpack.c.0.s8 %v854
    %v856 = vlaneseq
    %v857 = vshrl.u32 %v856, 7
    %v858 = vsub.s32 %v855, %v857
    %v859 = vrot.slane %v845, %v858
    %v860 = vcombine.high %v852, %v852
    %v861 = vcombine.high %v859, %v859
    %v862 = vcombine.high %v842, %v842
    %v864 = vunpack.c.l.s4 1983009808
    %v865 = vunpack.c.0.s8 %v864
    %v866 = vlaneseq
    %v867 = vshrl.u32 %v866, 7
    %v868 = vsub.s32 %v865, %v867
    %v869 = vrot.slane %v842, %v868
    %v871 = vunpack.c.l.s4 1983009808
    %v872 = vunpack.c.0.s8 %v871
    %v873 = vlaneseq
    %v874 = vshrl.u32 %v873, 7
    %v875 = vsub.s32 %v872, %v874
    %v876 = vrot.slane %v862, %v875
    %v877 = vcombine.high %v869, %v869
    %v878 = vcombine.high %v876, %v876
    %s887 = scalar_lea.vmem [#allocation10], 2
    %888 = vst.msk [vmem:[%s887] sm:$0x3] %vm832, %v852
    %889 = vst.msk [vmem:[%s887 + $0x4] sm:$0x3] %vm832, %v860
    %890 = vst.msk [vmem:[%s887 + $0x8] sm:$0x3] %vm832, %v859
    %891 = vst.msk [vmem:[%s887 + $0xc] sm:$0x3] %vm832, %v861
    %892 = vst.msk [vmem:[%s887 + $0x10] sm:$0x3] %vm832, %v869
    %893 = vst.msk [vmem:[%s887 + $0x14] sm:$0x3] %vm832, %v877
    %894 = vst.msk [vmem:[%s887 + $0x18] sm:$0x3] %vm832, %v876
    %895 = vst.msk [vmem:[%s887 + $0x1c] sm:$0x3] %vm832, %v878
    // Predicated region
    $region42: #{tpu_custom_call.1} parent=1 // pred_check
      _
    $region43: #{tpu_custom_call.1} parent=1 // pred_check_branch
      %897 = sbr.rel (0) target = $region45
    $region44: #{tpu_custom_call.1} parent=1 // pred_region
      %s899 = ssub.s32 512, 512
      %900 = vsyncadd [#allocation4], %s899
      %s901 = sshll.u32 [#allocation10], 4
      %s902 = int_to_ptr.vmem [resolvable:$true] %s901
      %907 = dma.vmem_to_hbm [thread:$0]  %s902, 512, %s6, [#allocation4], 32, 32, 2
    $region45: #{tpu_custom_call.1} parent=1 // pred_fallthru
      _
    // Predicated region
    $region46: #{tpu_custom_call.1} parent=1 // pred_check
      _
    $region47: #{tpu_custom_call.1} parent=1 // pred_check_branch
      %909 = sbr.rel (0) target = $region49
    $region48: #{tpu_custom_call.1} parent=1 // pred_region
      %910 = dma.done [#allocation4], 512
    $region49: #{tpu_custom_call.1} parent=1 // pred_fallthru
      _
    %911 = vsyncpa [#allocation3], 1
    %912 = vsyncpa [#allocation6], 1
    %913 = vsyncpa [#allocation9], 1
    %914 = vsyncpa [#allocation4], 1

</llo_original>
